<compile_context>
chip_gen: v5e
topology: v5e:2x2
jax: 0.10.0
libtpu: 0.0.40
codegen_flags: <defaults>
</compile_context>

<pallas_src>
import functools

import jax
import jax.numpy as jnp
from jax.experimental import pallas as pl
from jax.experimental.pallas import tpu as pltpu


def res_layer_kernel(x_ref, w1_ref, b1_ref, w2_ref, b2_ref, o_ref):
    x = x_ref[...]                                        # (tile_b, D) f32
    # Linear 1 on the MXU: bf16 operands, f32 accumulation; bias + ReLU in f32.
    h1 = jnp.dot(x.astype(jnp.bfloat16), w1_ref[...],
                 preferred_element_type=jnp.float32)
    h1 = jnp.maximum(h1 + b1_ref[...], 0.0)
    # Linear 2: same mixed-precision recipe.
    h2 = jnp.dot(h1.astype(jnp.bfloat16), w2_ref[...],
                 preferred_element_type=jnp.float32)
    h2 = jnp.maximum(h2 + b2_ref[...], 0.0)
    # Residual add against the exact f32 input; single cast at the store.
    o_ref[...] = (h2 + x).astype(o_ref.dtype)


@functools.partial(jax.jit, static_argnames=("tile_b",))
def res_layer(x, w1, b1, w2, b2, *, tile_b=256):
    """x: (B, D). w1, w2: (D, D) already transposed to (in, out). b1, b2: (D,)."""
    B, D = x.shape
    out_dtype = x.dtype

    # Batch tile: cap at tile_b, keep it a multiple of 8 (sublane), pad B so
    # the grid divides evenly (padded rows are computed then sliced off).
    tile_b = max(8, (min(tile_b, max(B, 8)) // 8) * 8)
    B_pad = pl.cdiv(B, tile_b) * tile_b
    if B_pad != B:
        x = jnp.pad(x, ((0, B_pad - B), (0, 0)))

    # Mixed precision: bf16 weights for the MXU, f32 biases for the epilogue.
    x_f32 = x.astype(jnp.float32)
    w1_bf = w1.astype(jnp.bfloat16)
    w2_bf = w2.astype(jnp.bfloat16)
    b1_2d = b1.reshape(1, D).astype(jnp.float32)
    b2_2d = b2.reshape(1, D).astype(jnp.float32)

    grid = (B_pad // tile_b,)

    # Explicit scoped-VMEM budget for this tile plan (double-buffered x/out,
    # resident bf16 weights, f32 intermediates) with generous headroom.
    vmem_bytes = (
        2 * tile_b * D * 4        # x tiles (f32, double buffered)
        + 2 * tile_b * D * 4      # out tiles (f32, double buffered)
        + 2 * 2 * D * D * 2       # W1 + W2 (bf16, default double buffering)
        + 2 * 2 * D * 4           # biases (f32)
        + 2 * tile_b * D * 4      # f32 intermediates headroom
    )
    vmem_limit = int(min(max(2 * vmem_bytes, 16 * 1024 * 1024),
                         48 * 1024 * 1024))

    out = pl.pallas_call(
        res_layer_kernel,
        out_shape=jax.ShapeDtypeStruct((B_pad, D), out_dtype),
        grid_spec=pltpu.PrefetchScalarGridSpec(
            num_scalar_prefetch=0,
            grid=grid,
            in_specs=[
                pl.BlockSpec((tile_b, D), lambda i: (i, 0)),   # x tile
                pl.BlockSpec((D, D), lambda i: (0, 0)),        # W1 (resident)
                pl.BlockSpec((1, D), lambda i: (0, 0)),        # b1
                pl.BlockSpec((D, D), lambda i: (0, 0)),        # W2 (resident)
                pl.BlockSpec((1, D), lambda i: (0, 0)),        # b2
            ],
            out_specs=pl.BlockSpec((tile_b, D), lambda i: (i, 0)),
        ),
        compiler_params=pltpu.CompilerParams(
            dimension_semantics=("parallel",),
            vmem_limit_bytes=vmem_limit,
        ),
    )(x_f32, w1_bf, b1_2d, w2_bf, b2_2d)

    out = out.astype(out_dtype)
    return out[:B] if B_pad != B else out


def init_params(key, in_dim, out_dim, dtype=jnp.float32):
    """Deterministic init matching PyTorch nn.Linear default (uniform +-1/sqrt(fan_in))."""
    k1, k2, k3, k4 = jax.random.split(key, 4)
    bound1 = 1.0 / (in_dim ** 0.5)
    bound2 = 1.0 / (out_dim ** 0.5)
    # PyTorch stores weight as (out, in); we keep that convention then transpose.
    w1_pt = jax.random.uniform(k1, (out_dim, in_dim), dtype, -bound1, bound1)
    b1 = jax.random.uniform(k2, (out_dim,), dtype, -bound1, bound1)
    w2_pt = jax.random.uniform(k3, (out_dim, out_dim), dtype, -bound2, bound2)
    b2 = jax.random.uniform(k4, (out_dim,), dtype, -bound2, bound2)
    return w1_pt, b1, w2_pt, b2


def reference(x, w1_pt, b1, w2_pt, b2):
    h1 = jnp.maximum(x @ w1_pt.T + b1, 0.0)
    h2 = jnp.maximum(h1 @ w2_pt.T + b2, 0.0)
    return h2 + x


if __name__ == "__main__":
    key = jax.random.PRNGKey(0)
    kx, kp = jax.random.split(key)

    # Small but TPU-friendly: D multiple of 128 (lane-dense stores, full MXU
    # contraction/output dims) and enough batch rows for 4 grid steps so the
    # pipeline overlaps DMA with compute (and both v7x TCs get work).
    B, D = 512, 128
    tile_b = 128
    x = jax.random.normal(kx, (B, D), dtype=jnp.float32)

    w1_pt, b1, w2_pt, b2 = init_params(kp, D, D)
    # Pre-transpose to (in, out) so the kernel does x @ W directly.
    w1 = jnp.asarray(w1_pt.T)
    w2 = jnp.asarray(w2_pt.T)

    out = res_layer(x, w1, b1, w2, b2, tile_b=tile_b)
    out = jax.block_until_ready(out)

    ref = reference(x, w1_pt, b1, w2_pt, b2)
    assert out.shape == (B, D)
    # Tolerance loosened vs the pure-f32 reference because the kernel feeds the
    # MXU bf16 operands (f32 accumulation, exact f32 residual) — standard mixed
    # precision.
    max_err = jnp.max(jnp.abs(out - ref))
    assert jnp.allclose(out, ref, atol=5e-2, rtol=5e-2), (
        f"mismatch vs reference, max abs err = {max_err}")

    print("KERNEL_OK")
</pallas_src>

<mosaic_0001>
module attributes {stable_mosaic.version = 11 : i64} {
  func.func @res_layer_kernel(%arg0: i32, %arg1: memref<128x128xf32, #tpu.memory_space<vmem>>, %arg2: memref<128x128xbf16, #tpu.memory_space<vmem>>, %arg3: memref<1x128xf32, #tpu.memory_space<vmem>>, %arg4: memref<128x128xbf16, #tpu.memory_space<vmem>>, %arg5: memref<1x128xf32, #tpu.memory_space<vmem>>, %arg6: memref<128x128xf32, #tpu.memory_space<vmem>>) attributes {dimension_semantics = [#tpu.dimension_semantics<parallel>], iteration_bounds = array<i64: 4>, scalar_prefetch = 0 : i64, scratch_operands = 0 : i64, tpu.core_type = #tpu.core_type<tc>, window_params = [{transform_indices = @transform_0, window_bounds = array<i64: 128, 128>}, {pipeline_mode = #tpu.pipeline_mode<synchronous>, transform_indices = @transform_1, window_bounds = array<i64: 128, 128>}, {pipeline_mode = #tpu.pipeline_mode<synchronous>, transform_indices = @transform_2, window_bounds = array<i64: 1, 128>}, {pipeline_mode = #tpu.pipeline_mode<synchronous>, transform_indices = @transform_3, window_bounds = array<i64: 128, 128>}, {pipeline_mode = #tpu.pipeline_mode<synchronous>, transform_indices = @transform_4, window_bounds = array<i64: 1, 128>}, {transform_indices = @transform_5, window_bounds = array<i64: 128, 128>}]} {
    %c0 = arith.constant 0 : index
    %c0_0 = arith.constant 0 : index
    %0 = vector.load %arg1[%c0, %c0_0] : memref<128x128xf32, #tpu.memory_space<vmem>>, vector<128x128xf32>
    %1 = arith.truncf %0 : vector<128x128xf32> to vector<128x128xbf16>
    %c0_1 = arith.constant 0 : index
    %c0_2 = arith.constant 0 : index
    %2 = vector.load %arg2[%c0_1, %c0_2] : memref<128x128xbf16, #tpu.memory_space<vmem>>, vector<128x128xbf16>
    %cst = arith.constant dense<0.000000e+00> : vector<128x128xf32>
    %3 = tpu.matmul %1, %2, %cst {dimension_numbers = #tpu.dot_dimension_numbers<[1], [0], [0], [1], [0, 0, 1, 1], [], []>} : vector<128x128xbf16>, vector<128x128xbf16>, vector<128x128xf32> -> vector<128x128xf32>
    %c0_3 = arith.constant 0 : index
    %c0_4 = arith.constant 0 : index
    %4 = vector.load %arg3[%c0_3, %c0_4] : memref<1x128xf32, #tpu.memory_space<vmem>>, vector<1x128xf32>
    %5 = vector.broadcast %4 : vector<1x128xf32> to vector<128x128xf32>
    %6 = arith.addf %3, %5 : vector<128x128xf32>
    %cst_5 = arith.constant 0.000000e+00 : f32
    %7 = vector.broadcast %cst_5 : f32 to vector<128x128xf32>
    %8 = arith.maximumf %6, %7 : vector<128x128xf32>
    %9 = arith.truncf %8 : vector<128x128xf32> to vector<128x128xbf16>
    %c0_6 = arith.constant 0 : index
    %c0_7 = arith.constant 0 : index
    %10 = vector.load %arg4[%c0_6, %c0_7] : memref<128x128xbf16, #tpu.memory_space<vmem>>, vector<128x128xbf16>
    %cst_8 = arith.constant dense<0.000000e+00> : vector<128x128xf32>
    %11 = tpu.matmul %9, %10, %cst_8 {dimension_numbers = #tpu.dot_dimension_numbers<[1], [0], [0], [1], [0, 0, 1, 1], [], []>} : vector<128x128xbf16>, vector<128x128xbf16>, vector<128x128xf32> -> vector<128x128xf32>
    %c0_9 = arith.constant 0 : index
    %c0_10 = arith.constant 0 : index
    %12 = vector.load %arg5[%c0_9, %c0_10] : memref<1x128xf32, #tpu.memory_space<vmem>>, vector<1x128xf32>
    %13 = vector.broadcast %12 : vector<1x128xf32> to vector<128x128xf32>
    %14 = arith.addf %11, %13 : vector<128x128xf32>
    %cst_11 = arith.constant 0.000000e+00 : f32
    %15 = vector.broadcast %cst_11 : f32 to vector<128x128xf32>
    %16 = arith.maximumf %14, %15 : vector<128x128xf32>
    %17 = arith.addf %16, %0 : vector<128x128xf32>
    %c0_12 = arith.constant 0 : index
    %c0_13 = arith.constant 0 : index
    %18 = vector.load %arg6[%c0_12, %c0_13] : memref<128x128xf32, #tpu.memory_space<vmem>>, vector<128x128xf32>
    tpu.vector_store %arg6[%c0_12, %c0_13], %17 {strides = array<i32>} : memref<128x128xf32, #tpu.memory_space<vmem>>, vector<128x128xf32>,
    return
  }
  func.func @transform_0(%arg0: i32) -> (i32, i32) {
    %c0_i32 = arith.constant 0 : i32
    %c0_i32_0 = arith.constant 0 : i32
    return %arg0, %c0_i32 : i32, i32
  }
  func.func @transform_1(%arg0: i32) -> (i32, i32) {
    %c0_i32 = arith.constant 0 : i32
    %c0_i32_0 = arith.constant 0 : i32
    %c0_i32_1 = arith.constant 0 : i32
    return %c0_i32, %c0_i32_0 : i32, i32
  }
  func.func @transform_2(%arg0: i32) -> (i32, i32) {
    %c0_i32 = arith.constant 0 : i32
    %c0_i32_0 = arith.constant 0 : i32
    %c0_i32_1 = arith.constant 0 : i32
    return %c0_i32, %c0_i32_0 : i32, i32
  }
  func.func @transform_3(%arg0: i32) -> (i32, i32) {
    %c0_i32 = arith.constant 0 : i32
    %c0_i32_0 = arith.constant 0 : i32
    %c0_i32_1 = arith.constant 0 : i32
    return %c0_i32, %c0_i32_0 : i32, i32
  }
  func.func @transform_4(%arg0: i32) -> (i32, i32) {
    %c0_i32 = arith.constant 0 : i32
    %c0_i32_0 = arith.constant 0 : i32
    %c0_i32_1 = arith.constant 0 : i32
    return %c0_i32, %c0_i32_0 : i32, i32
  }
  func.func @transform_5(%arg0: i32) -> (i32, i32) {
    %c0_i32 = arith.constant 0 : i32
    %c0_i32_0 = arith.constant 0 : i32
    return %arg0, %c0_i32 : i32, i32
  }
}

</mosaic_0001>

<llo_original>
// kernel: res_layer.1
$region0: #{res_layer.1}
  #allocation0 [shape = 'u32[]', space=smem, size = 0x4, offset = 0x4, fixed_abs, tag = 'smem constant byte address 0x4 - core index']
  #allocation1 [shape = 'u32[72,128]{1,0:T(1,128)}', space=vmem, size = 0x9000, scoped, tag = 'internal scratch']
  %s0 = inlined_call_operand.hbm [shape: f32[512,128], index: 0, kind: input, shape index: {}]
  %s1 = inlined_call_operand.vmem [shape: bf16[128,128], index: 1, kind: input, shape index: {}]
  %s2 = inlined_call_operand.vmem [shape: f32[1,128], index: 2, kind: input, shape index: {}]
  %s3 = inlined_call_operand.vmem [shape: bf16[128,128], index: 3, kind: input, shape index: {}]
  %s4 = inlined_call_operand.vmem [shape: f32[1,128], index: 4, kind: input, shape index: {}]
  %s5 = inlined_call_operand.hbm [shape: f32[512,128], index: 5, kind: output, shape index: {}]
  %s6 = sld [smem:[#allocation0]]
  $region57: #{res_layer.1} parent=0
    _
  %s8 = ssub.s32 1, %s6
  %s9 = scalar_select 0, %s8, %s6
  $region1: #{res_layer.1} parent=0
    #allocation2 [shape = 'u8[131072]{0}', space=vmem, size = 0x20000, scoped, tag = 'input window, operand 0']
    #allocation3 [shape = 's32[2]{0}', space=sflag, size = 0x8, scoped, tag = 'scoped memory for res_layer.1']
    #allocation4 [shape = 's32[2]{0}', space=sflag, size = 0x8, scoped, tag = 'scoped memory for res_layer.1']
    #allocation5 [shape = 'u8[131072]{0}', space=vmem, size = 0x20000, scoped, tag = 'output window, operand 0']
    %10 = vsyncpa [#allocation3], 0
    %s11 = scalar_lea.sflag [#allocation3], 1
    %12 = vsyncpa %s11, 0
    %13 = vsyncpa [#allocation4], 0
    %s14 = scalar_lea.sflag [#allocation4], 1
    %15 = vsyncpa %s14, 0
    loop: start=0, step=1, limit=6
    $region2: #{res_layer.1} parent=1 // loop_pre_header
      _
    $region3: #{res_layer.1} parent=1 // loop_header
      %s17 = sphi 0, %s21
      %p18 = scmp.ge.s32.totalorder %s17, 6
      %s27 = sphi 0, %s29
      %s30 = sphi 0, %s27
      %s31 = sphi 0, %s30
      %s47 = sphi 0, %s31
      %s51 = sphi 0, %s51
      %s53 = sphi 0, %s51
      %s54 = sphi 0, %s53
      %s68 = sphi 0, %s54
      %s72 = sphi 0, %s72
      %s74 = sphi 0, %s72
      %s75 = sphi 0, %s74
      %s89 = sphi 0, %s75
      %s93 = sphi 0, %s93
      %s95 = sphi 0, %s93
      %s96 = sphi 0, %s95
      %s110 = sphi 0, %s96
      %s114 = sphi 0, %s114
      %s116 = sphi 0, %s114
      %s117 = sphi 0, %s116
      %s131 = sphi 0, %s117
      %s137 = sphi 0, %s139
      %s140 = sphi 0, %s137
      %s141 = sphi 0, %s140
      %s157 = sphi 0, %s141
    $region4: #{res_layer.1} parent=1 // loop_header_branch
      %20 = sbr.rel (%p18) target = $region8
    $region5: #{res_layer.1} parent=1 // loop_body
      %s22 = ssub.s32 %s17, 1
      %s23 = ssub.s32 %s17, 2
      %s24 = sadd.s32 %s17, 1
      %s25 = ssub.s32 %s17, %s24
      %p26 = scmp.eq.s32.totalorder %s25, 0
      %s28 = sadd.s32 %s27, 1
      %s29 = scalar_select %p26, %s27, %s28
      %p32 = pneg %p26
      %p33 = scmp.eq.s32.totalorder %s17, 3
      %p34 = por %p32, %p33
      %p35 = scmp.ne.s32.totalorder %s27, %s30
      %p36 = scmp.eq.s32.totalorder %s17, 0
      %p37 = por %p35, %p36
      %p38 = scmp.ne.s32.totalorder %s27, %s30
      %p39 = scmp.eq.s32.totalorder %s22, 3
      %p40 = por %p38, %p39
      %p41 = scmp.ne.s32.totalorder %s30, %s31
      %p42 = scmp.eq.s32.totalorder %s22, 0
      %p43 = por %p41, %p42
      %p44 = scmp.ne.s32.totalorder %s30, %s31
      %p45 = scmp.eq.s32.totalorder %s23, 3
      %p46 = por %p44, %p45
      %p48 = scmp.ne.s32.totalorder %s31, %s47
      %p49 = scmp.eq.s32.totalorder %s23, 0
      %p50 = por %p48, %p49
      %s52 = sadd.s32 %s51, 1
      %p55 = scmp.eq.s32.totalorder %s17, 3
      %p56 = scmp.ne.s32.totalorder %s51, %s53
      %p57 = scmp.eq.s32.totalorder %s17, 0
      %p58 = por %p56, %p57
      %p59 = scmp.ne.s32.totalorder %s51, %s53
      %p60 = scmp.eq.s32.totalorder %s22, 3
      %p61 = por %p59, %p60
      %p62 = scmp.ne.s32.totalorder %s53, %s54
      %p63 = scmp.eq.s32.totalorder %s22, 0
      %p64 = por %p62, %p63
      %p65 = scmp.ne.s32.totalorder %s53, %s54
      %p66 = scmp.eq.s32.totalorder %s23, 3
      %p67 = por %p65, %p66
      %p69 = scmp.ne.s32.totalorder %s54, %s68
      %p70 = scmp.eq.s32.totalorder %s23, 0
      %p71 = por %p69, %p70
      %s73 = sadd.s32 %s72, 1
      %p76 = scmp.eq.s32.totalorder %s17, 3
      %p77 = scmp.ne.s32.totalorder %s72, %s74
      %p78 = scmp.eq.s32.totalorder %s17, 0
      %p79 = por %p77, %p78
      %p80 = scmp.ne.s32.totalorder %s72, %s74
      %p81 = scmp.eq.s32.totalorder %s22, 3
      %p82 = por %p80, %p81
      %p83 = scmp.ne.s32.totalorder %s74, %s75
      %p84 = scmp.eq.s32.totalorder %s22, 0
      %p85 = por %p83, %p84
      %p86 = scmp.ne.s32.totalorder %s74, %s75
      %p87 = scmp.eq.s32.totalorder %s23, 3
      %p88 = por %p86, %p87
      %p90 = scmp.ne.s32.totalorder %s75, %s89
      %p91 = scmp.eq.s32.totalorder %s23, 0
      %p92 = por %p90, %p91
      %s94 = sadd.s32 %s93, 1
      %p97 = scmp.eq.s32.totalorder %s17, 3
      %p98 = scmp.ne.s32.totalorder %s93, %s95
      %p99 = scmp.eq.s32.totalorder %s17, 0
      %p100 = por %p98, %p99
      %p101 = scmp.ne.s32.totalorder %s93, %s95
      %p102 = scmp.eq.s32.totalorder %s22, 3
      %p103 = por %p101, %p102
      %p104 = scmp.ne.s32.totalorder %s95, %s96
      %p105 = scmp.eq.s32.totalorder %s22, 0
      %p106 = por %p104, %p105
      %p107 = scmp.ne.s32.totalorder %s95, %s96
      %p108 = scmp.eq.s32.totalorder %s23, 3
      %p109 = por %p107, %p108
      %p111 = scmp.ne.s32.totalorder %s96, %s110
      %p112 = scmp.eq.s32.totalorder %s23, 0
      %p113 = por %p111, %p112
      %s115 = sadd.s32 %s114, 1
      %p118 = scmp.eq.s32.totalorder %s17, 3
      %p119 = scmp.ne.s32.totalorder %s114, %s116
      %p120 = scmp.eq.s32.totalorder %s17, 0
      %p121 = por %p119, %p120
      %p122 = scmp.ne.s32.totalorder %s114, %s116
      %p123 = scmp.eq.s32.totalorder %s22, 3
      %p124 = por %p122, %p123
      %p125 = scmp.ne.s32.totalorder %s116, %s117
      %p126 = scmp.eq.s32.totalorder %s22, 0
      %p127 = por %p125, %p126
      %p128 = scmp.ne.s32.totalorder %s116, %s117
      %p129 = scmp.eq.s32.totalorder %s23, 3
      %p130 = por %p128, %p129
      %p132 = scmp.ne.s32.totalorder %s117, %s131
      %p133 = scmp.eq.s32.totalorder %s23, 0
      %p134 = por %p132, %p133
      %s135 = ssub.s32 %s17, %s24
      %p136 = scmp.eq.s32.totalorder %s135, 0
      %s138 = sadd.s32 %s137, 1
      %s139 = scalar_select %p136, %s137, %s138
      %p142 = pneg %p136
      %p143 = scmp.eq.s32.totalorder %s17, 3
      %p144 = por %p142, %p143
      %p145 = scmp.ne.s32.totalorder %s137, %s140
      %p146 = scmp.eq.s32.totalorder %s17, 0
      %p147 = por %p145, %p146
      %p148 = scmp.ne.s32.totalorder %s137, %s140
      %p149 = scmp.eq.s32.totalorder %s22, 3
      %p150 = por %p148, %p149
      %p151 = scmp.ne.s32.totalorder %s140, %s141
      %p152 = scmp.eq.s32.totalorder %s22, 0
      %p153 = por %p151, %p152
      %p154 = scmp.ne.s32.totalorder %s140, %s141
      %p155 = scmp.eq.s32.totalorder %s23, 3
      %p156 = por %p154, %p155
      %p158 = scmp.ne.s32.totalorder %s141, %s157
      %p159 = scmp.eq.s32.totalorder %s23, 0
      %p160 = por %p158, %p159
      %p161 = scmp.le.s32.totalorder 1, %s17
      %p162 = scmp.lt.s32.totalorder %s17, 5
      %p163 = pnand %p161, %p162
      %p164 = pneg %p163
      // Predicated region
      $region9: #{res_layer.1} parent=5 // pred_check
        _
      $region10: #{res_layer.1} parent=5 // pred_check_branch
        %166 = sbr.rel (%p163) target = $region12
      $region11: #{res_layer.1} parent=5 // pred_region
        %s167 = ssub.s32 %s17, 1
        // Predicated region
        $region13: #{res_layer.1} parent=11 // pred_check
          %p168 = pneg %p64
        $region14: #{res_layer.1} parent=11 // pred_check_branch
          %170 = sbr.rel (%p168) target = $region16
        $region15: #{res_layer.1} parent=11 // pred_region
          _
        $region16: #{res_layer.1} parent=11 // pred_fallthru
          _
        // Predicated region
        $region17: #{res_layer.1} parent=11 // pred_check
          %p171 = pneg %p85
        $region18: #{res_layer.1} parent=11 // pred_check_branch
          %173 = sbr.rel (%p171) target = $region20
        $region19: #{res_layer.1} parent=11 // pred_region
          _
        $region20: #{res_layer.1} parent=11 // pred_fallthru
          _
        // Predicated region
        $region21: #{res_layer.1} parent=11 // pred_check
          %p174 = pneg %p106
        $region22: #{res_layer.1} parent=11 // pred_check_branch
          %176 = sbr.rel (%p174) target = $region24
        $region23: #{res_layer.1} parent=11 // pred_region
          _
        $region24: #{res_layer.1} parent=11 // pred_fallthru
          _
        // Predicated region
        $region25: #{res_layer.1} parent=11 // pred_check
          %p177 = pneg %p127
        $region26: #{res_layer.1} parent=11 // pred_check_branch
          %179 = sbr.rel (%p177) target = $region28
        $region27: #{res_layer.1} parent=11 // pred_region
          _
        $region28: #{res_layer.1} parent=11 // pred_fallthru
          _
      $region12: #{res_layer.1} parent=5 // pred_fallthru
        _
      %p180 = scmp.lt.s32.totalorder %s17, 4
      // Predicated region
      $region29: #{res_layer.1} parent=5 // pred_check
        %p181 = pneg %p180
      $region30: #{res_layer.1} parent=5 // pred_check_branch
        %183 = sbr.rel (%p181) target = $region32
      $region31: #{res_layer.1} parent=5 // pred_region
        // Predicated region
        $region33: #{res_layer.1} parent=31 // pred_check
          %p184 = pneg %p37
        $region34: #{res_layer.1} parent=31 // pred_check_branch
          %186 = sbr.rel (%p184) target = $region36
        $region35: #{res_layer.1} parent=31 // pred_region
          %s187 = sand.u32 %s27, 1
          %s188 = scalar_lea.sflag [#allocation3], %s187
          %s189 = sand.u32 %s27, 1
          %s190 = smul.addr %s189, 128
          %s191 = scalar_lea.vmem [#allocation2], %s190
          %s192 = smul.u32 16, %s17
          %194 = vsyncadd %s188, 0
          %s195 = smul.addr %s192, 8
          %s196 = scalar_lea.hbm %s0, %s195
          %s197 = sshll.u32 %s196, 4
          %s198 = int_to_ptr.hbm [resolvable:$true] %s197
          %s199 = sshll.u32 %s191, 4
          %s200 = int_to_ptr.vmem [resolvable:$true] %s199
          %205 = dma.hbm_to_vmem [thread:$0]  %s198, 2048, %s200, %s188, 128, 128, 8
        $region36: #{res_layer.1} parent=31 // pred_fallthru
          _
      $region32: #{res_layer.1} parent=5 // pred_fallthru
        _
      %p206 = scmp.le.s32.totalorder 1, %s17
      %p207 = scmp.lt.s32.totalorder %s17, 5
      %p208 = pnand %p206, %p207
      %p209 = pneg %p208
      // Predicated region
      $region37: #{res_layer.1} parent=5 // pred_check
        _
      $region38: #{res_layer.1} parent=5 // pred_check_branch
        %211 = sbr.rel (%p208) target = $region40
      $region39: #{res_layer.1} parent=5 // pred_region
        %s212 = ssub.s32 %s17, 1
        %s213 = sand.u32 %s30, 1
        %s214 = scalar_lea.sflag [#allocation3], %s213
        %s215 = sand.u32 %s30, 1
        %s216 = smul.addr %s215, 128
        %s217 = scalar_lea.vmem [#allocation2], %s216
        // Predicated region
        $region41: #{res_layer.1} parent=39 // pred_check
          %p218 = pneg %p43
        $region42: #{res_layer.1} parent=39 // pred_check_branch
          %220 = sbr.rel (%p218) target = $region44
        $region43: #{res_layer.1} parent=39 // pred_region
          %222 = dma.done %s214, 2048
        $region44: #{res_layer.1} parent=39 // pred_fallthru
          _
        %s223 = sand.u32 %s30, 1
        %s224 = scalar_lea.sflag [#allocation3], %s223
        %s225 = sand.u32 %s30, 1
        %s226 = smul.addr %s225, 128
        %s227 = scalar_lea.vmem [#allocation2], %s226
        %p228 = pneg %p43
        %p229 = pneg %p40
        %p230 = pneg %p64
        %p231 = pneg %p61
        %p232 = pneg %p85
        %p233 = pneg %p82
        %p234 = pneg %p106
        %p235 = pneg %p103
        %p236 = pneg %p127
        %p237 = pneg %p124
        %p238 = pneg %p153
        %p239 = pneg %p150
        %s240 = sand.u32 %s140, 1
        %s241 = scalar_lea.sflag [#allocation4], %s240
        %s242 = sand.u32 %s140, 1
        %s243 = smul.addr %s242, 128
        %s244 = scalar_lea.vmem [#allocation5], %s243
        %s245 = smul.u32 16, %s22
        %s246 = smul.u32 16, %s22
        %v247 = vld [vmem:[%s217] sm:$0xff]
        %v248 = vld [vmem:[%s217 + $0x8] sm:$0xff]
        %v249 = vld [vmem:[%s217 + $0x10] sm:$0xff]
        %v250 = vld [vmem:[%s217 + $0x18] sm:$0xff]
        %v251 = vld [vmem:[%s217 + $0x20] sm:$0xff]
        %v252 = vld [vmem:[%s217 + $0x28] sm:$0xff]
        %v253 = vld [vmem:[%s217 + $0x30] sm:$0xff]
        %v254 = vld [vmem:[%s217 + $0x38] sm:$0xff]
        %v255 = vld [vmem:[%s217 + $0x40] sm:$0xff]
        %v256 = vld [vmem:[%s217 + $0x48] sm:$0xff]
        %v257 = vld [vmem:[%s217 + $0x50] sm:$0xff]
        %v258 = vld [vmem:[%s217 + $0x58] sm:$0xff]
        %v259 = vld [vmem:[%s217 + $0x60] sm:$0xff]
        %v260 = vld [vmem:[%s217 + $0x68] sm:$0xff]
        %v261 = vld [vmem:[%s217 + $0x70] sm:$0xff]
        %v262 = vld [vmem:[%s217 + $0x78] sm:$0xff]
        %v263 = vpack.c.bf16 %v248, %v247
        %v264 = vpack.c.bf16 %v250, %v249
        %v265 = vpack.c.bf16 %v252, %v251
        %v266 = vpack.c.bf16 %v254, %v253
        %v267 = vpack.c.bf16 %v256, %v255
        %v268 = vpack.c.bf16 %v258, %v257
        %v269 = vpack.c.bf16 %v260, %v259
        %v270 = vpack.c.bf16 %v262, %v261
        %v271 = vld [vmem:[%s1] sm:$0xf]
        %v272 = vld [vmem:[%s1 + $0x4] sm:$0xf]
        %v273 = vld [vmem:[%s1 + $0x8] sm:$0xf]
        %v274 = vld [vmem:[%s1 + $0xc] sm:$0xf]
        %v275 = vld [vmem:[%s1 + $0x10] sm:$0xf]
        %v276 = vld [vmem:[%s1 + $0x14] sm:$0xf]
        %v277 = vld [vmem:[%s1 + $0x18] sm:$0xf]
        %v278 = vld [vmem:[%s1 + $0x1c] sm:$0xf]
        %v279 = vld [vmem:[%s1 + $0x20] sm:$0xf]
        %v280 = vld [vmem:[%s1 + $0x24] sm:$0xf]
        %v281 = vld [vmem:[%s1 + $0x28] sm:$0xf]
        %v282 = vld [vmem:[%s1 + $0x2c] sm:$0xf]
        %v283 = vld [vmem:[%s1 + $0x30] sm:$0xf]
        %v284 = vld [vmem:[%s1 + $0x34] sm:$0xf]
        %v285 = vld [vmem:[%s1 + $0x38] sm:$0xf]
        %v286 = vld [vmem:[%s1 + $0x3c] sm:$0xf]
        %v287 = vld [vmem:[%s2] sm:$0x1]
        %v289 = vperm.slane %v287, 0
        %v307 = vunpack.c.l.b16 %v271
        %v308 = vunpack.c.l.b16 %v272
        %v309 = vunpack.c.l.b16 %v273
        %v310 = vunpack.c.l.b16 %v274
        %v311 = vunpack.c.l.b16 %v275
        %v312 = vunpack.c.l.b16 %v276
        %v313 = vunpack.c.l.b16 %v277
        %v314 = vunpack.c.l.b16 %v278
        %v315 = vunpack.c.l.b16 %v279
        %v316 = vunpack.c.l.b16 %v280
        %v317 = vunpack.c.l.b16 %v281
        %v318 = vunpack.c.l.b16 %v282
        %v319 = vunpack.c.l.b16 %v283
        %v320 = vunpack.c.l.b16 %v284
        %v321 = vunpack.c.l.b16 %v285
        %v322 = vunpack.c.l.b16 %v286
        %v323 = vpack.c.b16 %v308, %v307
        %v324 = vpack.c.b16 %v310, %v309
        %v325 = vpack.c.b16 %v312, %v311
        %v326 = vpack.c.b16 %v314, %v313
        %v327 = vpack.c.b16 %v316, %v315
        %v328 = vpack.c.b16 %v318, %v317
        %v329 = vpack.c.b16 %v320, %v319
        %v330 = vpack.c.b16 %v322, %v321
        %339 = vmatpush.bf16.msra.mxu0 %v330
        %340 = vmatpush.bf16.msra.mxu0 %v329
        %341 = vmatpush.bf16.msra.mxu0 %v328
        %342 = vmatpush.bf16.msra.mxu0 %v327
        %343 = vmatpush.bf16.msra.mxu0 %v326
        %344 = vmatpush.bf16.msra.mxu0 %v325
        %345 = vmatpush.bf16.msra.mxu0 %v324
        %346 = vmatpush.bf16.msra.mxu0 %v323
        %347 = vmatmul.bf16.gmra.mxu0 %v263
        %v348 = vpop.f32.mrf.mxu0
        %v349 = vadd.f32 %v289, %v348
        %v350 = vpop.f32.mrf.mxu0
        %v351 = vadd.f32 %v289, %v350
        %352 = vmatmul.bf16.gmra.mxu0 %v264
        %v353 = vpop.f32.mrf.mxu0
        %v354 = vadd.f32 %v289, %v353
        %v355 = vpop.f32.mrf.mxu0
        %v356 = vadd.f32 %v289, %v355
        %357 = vmatmul.bf16.gmra.mxu0 %v265
        %v358 = vpop.f32.mrf.mxu0
        %v359 = vadd.f32 %v289, %v358
        %v360 = vpop.f32.mrf.mxu0
        %v361 = vadd.f32 %v289, %v360
        %362 = vmatmul.bf16.gmra.mxu0 %v266
        %v363 = vpop.f32.mrf.mxu0
        %v364 = vadd.f32 %v289, %v363
        %v365 = vpop.f32.mrf.mxu0
        %v366 = vadd.f32 %v289, %v365
        %367 = vmatmul.bf16.gmra.mxu0 %v267
        %v368 = vpop.f32.mrf.mxu0
        %v369 = vadd.f32 %v289, %v368
        %v370 = vpop.f32.mrf.mxu0
        %v371 = vadd.f32 %v289, %v370
        %372 = vmatmul.bf16.gmra.mxu0 %v268
        %v373 = vpop.f32.mrf.mxu0
        %v374 = vadd.f32 %v289, %v373
        %v375 = vpop.f32.mrf.mxu0
        %v376 = vadd.f32 %v289, %v375
        %377 = vmatmul.bf16.gmra.mxu0 %v269
        %v378 = vpop.f32.mrf.mxu0
        %v379 = vadd.f32 %v289, %v378
        %v380 = vpop.f32.mrf.mxu0
        %v381 = vadd.f32 %v289, %v380
        %382 = vmatmul.bf16.gmra.mxu0 %v270
        %v383 = vpop.f32.mrf.mxu0
        %v384 = vadd.f32 %v289, %v383
        %v385 = vpop.f32.mrf.mxu0
        %v386 = vadd.f32 %v289, %v385
        %387 = vdwg.mxu0
        %v388 = vmax.f32 %v349, 0.0
        %v389 = vmax.f32 %v351, 0.0
        %v390 = vmax.f32 %v354, 0.0
        %v391 = vmax.f32 %v356, 0.0
        %v392 = vmax.f32 %v359, 0.0
        %v393 = vmax.f32 %v361, 0.0
        %v394 = vmax.f32 %v364, 0.0
        %v395 = vmax.f32 %v366, 0.0
        %v396 = vmax.f32 %v369, 0.0
        %v397 = vmax.f32 %v371, 0.0
        %v398 = vmax.f32 %v374, 0.0
        %v399 = vmax.f32 %v376, 0.0
        %v400 = vmax.f32 %v379, 0.0
        %v401 = vmax.f32 %v381, 0.0
        %v402 = vmax.f32 %v384, 0.0
        %v403 = vmax.f32 %v386, 0.0
        %v404 = vpack.c.bf16 %v389, %v388
        %v405 = vpack.c.bf16 %v391, %v390
        %v406 = vpack.c.bf16 %v393, %v392
        %v407 = vpack.c.bf16 %v395, %v394
        %v408 = vpack.c.bf16 %v397, %v396
        %v409 = vpack.c.bf16 %v399, %v398
        %v410 = vpack.c.bf16 %v401, %v400
        %v411 = vpack.c.bf16 %v403, %v402
        %v412 = vld [vmem:[%s3] sm:$0xf]
        %v413 = vld [vmem:[%s3 + $0x4] sm:$0xf]
        %v414 = vld [vmem:[%s3 + $0x8] sm:$0xf]
        %v415 = vld [vmem:[%s3 + $0xc] sm:$0xf]
        %v416 = vld [vmem:[%s3 + $0x10] sm:$0xf]
        %v417 = vld [vmem:[%s3 + $0x14] sm:$0xf]
        %v418 = vld [vmem:[%s3 + $0x18] sm:$0xf]
        %v419 = vld [vmem:[%s3 + $0x1c] sm:$0xf]
        %v420 = vld [vmem:[%s3 + $0x20] sm:$0xf]
        %v421 = vld [vmem:[%s3 + $0x24] sm:$0xf]
        %v422 = vld [vmem:[%s3 + $0x28] sm:$0xf]
        %v423 = vld [vmem:[%s3 + $0x2c] sm:$0xf]
        %v424 = vld [vmem:[%s3 + $0x30] sm:$0xf]
        %v425 = vld [vmem:[%s3 + $0x34] sm:$0xf]
        %v426 = vld [vmem:[%s3 + $0x38] sm:$0xf]
        %v427 = vld [vmem:[%s3 + $0x3c] sm:$0xf]
        %v428 = vld [vmem:[%s4] sm:$0x1]
        %v430 = vperm.slane %v428, 0
        %v448 = vunpack.c.l.b16 %v412
        %v449 = vunpack.c.l.b16 %v413
        %v450 = vunpack.c.l.b16 %v414
        %v451 = vunpack.c.l.b16 %v415
        %v452 = vunpack.c.l.b16 %v416
        %v453 = vunpack.c.l.b16 %v417
        %v454 = vunpack.c.l.b16 %v418
        %v455 = vunpack.c.l.b16 %v419
        %v456 = vunpack.c.l.b16 %v420
        %v457 = vunpack.c.l.b16 %v421
        %v458 = vunpack.c.l.b16 %v422
        %v459 = vunpack.c.l.b16 %v423
        %v460 = vunpack.c.l.b16 %v424
        %v461 = vunpack.c.l.b16 %v425
        %v462 = vunpack.c.l.b16 %v426
        %v463 = vunpack.c.l.b16 %v427
        %v464 = vpack.c.b16 %v449, %v448
        %v465 = vpack.c.b16 %v451, %v450
        %v466 = vpack.c.b16 %v453, %v452
        %v467 = vpack.c.b16 %v455, %v454
        %v468 = vpack.c.b16 %v457, %v456
        %v469 = vpack.c.b16 %v459, %v458
        %v470 = vpack.c.b16 %v461, %v460
        %v471 = vpack.c.b16 %v463, %v462
        %480 = vmatpush.bf16.msra.mxu0 %v471
        %481 = vmatpush.bf16.msra.mxu0 %v470
        %482 = vmatpush.bf16.msra.mxu0 %v469
        %483 = vmatpush.bf16.msra.mxu0 %v468
        %484 = vmatpush.bf16.msra.mxu0 %v467
        %485 = vmatpush.bf16.msra.mxu0 %v466
        %486 = vmatpush.bf16.msra.mxu0 %v465
        %487 = vmatpush.bf16.msra.mxu0 %v464
        %488 = vmatmul.bf16.gmra.mxu0 %v404
        %v489 = vpop.f32.mrf.mxu0
        %v490 = vadd.f32 %v430, %v489
        %v491 = vpop.f32.mrf.mxu0
        %v492 = vadd.f32 %v430, %v491
        %493 = vmatmul.bf16.gmra.mxu0 %v405
        %v494 = vpop.f32.mrf.mxu0
        %v495 = vadd.f32 %v430, %v494
        %v496 = vpop.f32.mrf.mxu0
        %v497 = vadd.f32 %v430, %v496
        %498 = vmatmul.bf16.gmra.mxu0 %v406
        %v499 = vpop.f32.mrf.mxu0
        %v500 = vadd.f32 %v430, %v499
        %v501 = vpop.f32.mrf.mxu0
        %v502 = vadd.f32 %v430, %v501
        %503 = vmatmul.bf16.gmra.mxu0 %v407
        %v504 = vpop.f32.mrf.mxu0
        %v505 = vadd.f32 %v430, %v504
        %v506 = vpop.f32.mrf.mxu0
        %v507 = vadd.f32 %v430, %v506
        %508 = vmatmul.bf16.gmra.mxu0 %v408
        %v509 = vpop.f32.mrf.mxu0
        %v510 = vadd.f32 %v430, %v509
        %v511 = vpop.f32.mrf.mxu0
        %v512 = vadd.f32 %v430, %v511
        %513 = vmatmul.bf16.gmra.mxu0 %v409
        %v514 = vpop.f32.mrf.mxu0
        %v515 = vadd.f32 %v430, %v514
        %v516 = vpop.f32.mrf.mxu0
        %v517 = vadd.f32 %v430, %v516
        %518 = vmatmul.bf16.gmra.mxu0 %v410
        %v519 = vpop.f32.mrf.mxu0
        %v520 = vadd.f32 %v430, %v519
        %v521 = vpop.f32.mrf.mxu0
        %v522 = vadd.f32 %v430, %v521
        %523 = vmatmul.bf16.gmra.mxu0 %v411
        %v524 = vpop.f32.mrf.mxu0
        %v525 = vadd.f32 %v430, %v524
        %v526 = vpop.f32.mrf.mxu0
        %v527 = vadd.f32 %v430, %v526
        %528 = vdwg.mxu0
        %v529 = vmax.f32 %v490, 0.0
        %v530 = vmax.f32 %v492, 0.0
        %v531 = vmax.f32 %v495, 0.0
        %v532 = vmax.f32 %v497, 0.0
        %v533 = vmax.f32 %v500, 0.0
        %v534 = vmax.f32 %v502, 0.0
        %v535 = vmax.f32 %v505, 0.0
        %v536 = vmax.f32 %v507, 0.0
        %v537 = vmax.f32 %v510, 0.0
        %v538 = vmax.f32 %v512, 0.0
        %v539 = vmax.f32 %v515, 0.0
        %v540 = vmax.f32 %v517, 0.0
        %v541 = vmax.f32 %v520, 0.0
        %v542 = vmax.f32 %v522, 0.0
        %v543 = vmax.f32 %v525, 0.0
        %v544 = vmax.f32 %v527, 0.0
        %v545 = vadd.f32 %v529, %v247
        %v546 = vadd.f32 %v530, %v248
        %v547 = vadd.f32 %v531, %v249
        %v548 = vadd.f32 %v532, %v250
        %v549 = vadd.f32 %v533, %v251
        %v550 = vadd.f32 %v534, %v252
        %v551 = vadd.f32 %v535, %v253
        %v552 = vadd.f32 %v536, %v254
        %v553 = vadd.f32 %v537, %v255
        %v554 = vadd.f32 %v538, %v256
        %v555 = vadd.f32 %v539, %v257
        %v556 = vadd.f32 %v540, %v258
        %v557 = vadd.f32 %v541, %v259
        %v558 = vadd.f32 %v542, %v260
        %v559 = vadd.f32 %v543, %v261
        %v560 = vadd.f32 %v544, %v262
        %561 = vst [vmem:[%s244] sm:$0xff] %v545
        %562 = vst [vmem:[%s244 + $0x8] sm:$0xff] %v546
        %563 = vst [vmem:[%s244 + $0x10] sm:$0xff] %v547
        %564 = vst [vmem:[%s244 + $0x18] sm:$0xff] %v548
        %565 = vst [vmem:[%s244 + $0x20] sm:$0xff] %v549
        %566 = vst [vmem:[%s244 + $0x28] sm:$0xff] %v550
        %567 = vst [vmem:[%s244 + $0x30] sm:$0xff] %v551
        %568 = vst [vmem:[%s244 + $0x38] sm:$0xff] %v552
        %569 = vst [vmem:[%s244 + $0x40] sm:$0xff] %v553
        %570 = vst [vmem:[%s244 + $0x48] sm:$0xff] %v554
        %571 = vst [vmem:[%s244 + $0x50] sm:$0xff] %v555
        %572 = vst [vmem:[%s244 + $0x58] sm:$0xff] %v556
        %573 = vst [vmem:[%s244 + $0x60] sm:$0xff] %v557
        %574 = vst [vmem:[%s244 + $0x68] sm:$0xff] %v558
        %575 = vst [vmem:[%s244 + $0x70] sm:$0xff] %v559
        %576 = vst [vmem:[%s244 + $0x78] sm:$0xff] %v560
        %s577 = sand.u32 %s140, 1
        %s578 = scalar_lea.sflag [#allocation4], %s577
        %s579 = sand.u32 %s140, 1
        %s580 = smul.addr %s579, 128
        %s581 = scalar_lea.vmem [#allocation5], %s580
        // Predicated region
        $region45: #{res_layer.1} parent=39 // pred_check
          %p582 = pneg %p150
        $region46: #{res_layer.1} parent=39 // pred_check_branch
          %584 = sbr.rel (%p582) target = $region48
        $region47: #{res_layer.1} parent=39 // pred_region
          %s585 = smul.u32 16, %s22
          %587 = vsyncadd %s578, 0
          %s588 = smul.addr %s585, 8
          %s589 = scalar_lea.hbm %s5, %s588
          %s590 = sshll.u32 %s581, 4
          %s591 = int_to_ptr.vmem [resolvable:$true] %s590
          %s592 = sshll.u32 %s589, 4
          %s593 = int_to_ptr.hbm [resolvable:$true] %s592
          %598 = dma.vmem_to_hbm [thread:$0]  %s591, 2048, %s593, %s578, 128, 128, 8
        $region48: #{res_layer.1} parent=39 // pred_fallthru
          _
      $region40: #{res_layer.1} parent=5 // pred_fallthru
        _
      %p599 = scmp.le.s32.totalorder 2, %s17
      // Predicated region
      $region49: #{res_layer.1} parent=5 // pred_check
        %p600 = pneg %p599
      $region50: #{res_layer.1} parent=5 // pred_check_branch
        %602 = sbr.rel (%p600) target = $region52
      $region51: #{res_layer.1} parent=5 // pred_region
        %s603 = ssub.s32 %s17, 2
        // Predicated region
        $region53: #{res_layer.1} parent=51 // pred_check
          %p604 = pneg %p156
        $region54: #{res_layer.1} parent=51 // pred_check_branch
          %606 = sbr.rel (%p604) target = $region56
        $region55: #{res_layer.1} parent=51 // pred_region
          %s607 = sand.u32 %s141, 1
          %s608 = scalar_lea.sflag [#allocation4], %s607
          %s609 = sand.u32 %s141, 1
          %s610 = smul.addr %s609, 128
          %s611 = scalar_lea.vmem [#allocation5], %s610
          %613 = dma.done %s608, 2048
        $region56: #{res_layer.1} parent=51 // pred_fallthru
          _
      $region52: #{res_layer.1} parent=5 // pred_fallthru
        _
    $region6: #{res_layer.1} parent=1 // loop_footer
      %s21 = sadd.s32 1, %s17
    $region7: #{res_layer.1} parent=1 // loop_footer_branch
      %16 = sbr.rel target = $region3
    $region8: #{res_layer.1} parent=1 // loop_exit
      _
    %614 = vsyncpa [#allocation3], 1
    %s615 = scalar_lea.sflag [#allocation3], 1
    %616 = vsyncpa %s615, 1
    %617 = vsyncpa [#allocation4], 1
    %s618 = scalar_lea.sflag [#allocation4], 1
    %619 = vsyncpa %s618, 1

</llo_original>
